<compile_context>
chip_gen: v7x
topology: tpu7x:2x2x1
jax: 0.10.0
libtpu: 0.0.40
codegen_flags: <defaults>
</compile_context>

<pallas_src>
import jax
import jax.numpy as jnp
from jax.experimental import pallas as pl
from jax.experimental.pallas import tpu as pltpu


def _round_up(x, m):
    return ((x + m - 1) // m) * m


def pointer_attention_kernel(qb_ref, cent_ref, wk_t_ref, v_ref, out_ref):
    # qb_ref  : (TB, 1, Hp)   precomputed cur @ Wq.T + bq + bk
    # cent_ref: (TB, TN, Hp)  centroid tile
    # wk_t_ref: (Hp, Hp)      Wk transposed (zero-padded)
    # v_ref   : (1, Hp)       v row (zero-padded)
    # out_ref : (TB, TN)
    tb, tn, hp = cent_ref.shape

    # Flatten batch x cluster rows so the MXU gets one (TB*TN, Hp) tile.
    rows = cent_ref[...].reshape(tb * tn, hp)
    k = jnp.dot(rows, wk_t_ref[...], preferred_element_type=jnp.float32)

    # e = tanh(k + qb)  (qb broadcasts over the TN axis)
    e = jnp.tanh(k.reshape(tb, tn, hp) + qb_ref[...])

    # scores = <e, v> over H: lane reduce lands directly in a (TB, TN) block,
    # no trailing transpose / masked single-column matmul.
    out_ref[...] = jnp.sum(e * v_ref[...], axis=-1).astype(out_ref.dtype)


def pointer_attention(cur_embedd, centroids, wq, bq, wk, bk, v):
    """
    cur_embedd: (B, 1, H), centroids: (B, N, H)
    wq, wk: (H, H) PyTorch-Linear weight (out, in); bq, bk: (H,); v: (1, H)
    returns: (B, N) float32
    """
    B, _, H = cur_embedd.shape
    N = centroids.shape[1]
    dt = jnp.float32

    # ---- hoisted prologue (single fused XLA op, B*H^2 flops total) --------
    qb = cur_embedd.astype(dt) @ wq.T.astype(dt) + bq.astype(dt) + bk.astype(dt)
    wk_t = wk.T.astype(dt)                         # (H, H)
    v_row = v.reshape(1, H).astype(dt)             # (1, H)
    cent = centroids.astype(dt)

    # ---- pad lane axis (H -> mult of 128) and N (-> mult of 8) ------------
    Hp = _round_up(max(H, 128), 128)
    Np = _round_up(N, 8)
    if Hp != H:
        ph = Hp - H
        qb = jnp.pad(qb, ((0, 0), (0, 0), (0, ph)))
        cent = jnp.pad(cent, ((0, 0), (0, 0), (0, ph)))
        wk_t = jnp.pad(wk_t, ((0, ph), (0, ph)))
        v_row = jnp.pad(v_row, ((0, 0), (0, ph)))
    if Np != N:
        cent = jnp.pad(cent, ((0, 0), (0, Np - N), (0, 0)))

    # ---- tile selection ----------------------------------------------------
    # Aim for >=256 rows per MXU call while keeping one centroid tile <=~4 MiB
    # so the double-buffered DMA fits inside the scoped-VMEM default on all
    # generations (v5e 16 MiB, v6e 32 MiB, v7x 32 MiB of 64 MiB physical).
    tile_budget_rows = max(256, min(4096, (4 << 20) // (Hp * 4)))
    if Np <= tile_budget_rows:
        tn = Np
        tb = min(B, max(1, tile_budget_rows // Np))
        if tb < B:
            # keep the output block's second-to-last dim sublane-aligned
            tb = min(B, max(8, (tb // 8) * 8))
    else:
        tb = 1
        tn = max(128, (tile_budget_rows // 128) * 128)

    grid = (pl.cdiv(B, tb), pl.cdiv(Np, tn))

    out_padded = pl.pallas_call(
        pointer_attention_kernel,
        out_shape=jax.ShapeDtypeStruct((B, Np), jnp.float32),
        grid_spec=pl.GridSpec(
            grid=grid,
            in_specs=[
                pl.BlockSpec((tb, 1, Hp), lambda bi, ni: (bi, 0, 0)),    # qb
                pl.BlockSpec((tb, tn, Hp), lambda bi, ni: (bi, ni, 0)),  # centroids
                pl.BlockSpec((Hp, Hp), lambda bi, ni: (0, 0)),           # Wk^T
                pl.BlockSpec((1, Hp), lambda bi, ni: (0, 0)),            # v row
            ],
            out_specs=pl.BlockSpec((tb, tn), lambda bi, ni: (bi, ni)),
        ),
        compiler_params=pltpu.CompilerParams(
            dimension_semantics=("parallel", "parallel")),
    )(qb, cent, wk_t, v_row)

    return out_padded[:, :N]


def pointer_attention_ref(cur_embedd, centroids, wq, bq, wk, bk, v):
    q = cur_embedd @ wq.T + bq           # (B, 1, H)
    k = centroids @ wk.T + bk            # (B, N, H)
    e = jnp.tanh(q + k)                  # (B, N, H)
    return (e @ v.T)[..., 0]             # (B, N)


if __name__ == "__main__":
    B, N, H = 2, 8, 32
    key = jax.random.PRNGKey(0)
    k1, k2, k3, k4, k5, k6, k7 = jax.random.split(key, 7)

    cur_embedd = jax.random.normal(k1, (B, 1, H), dtype=jnp.float32)
    centroids = jax.random.normal(k2, (B, N, H), dtype=jnp.float32)

    # PyTorch-Linear parameter shapes: weight (out, in), bias (out,)
    scale = 1.0 / jnp.sqrt(H)
    wq = jax.random.uniform(k3, (H, H), jnp.float32, -scale, scale)
    bq = jax.random.uniform(k4, (H,), jnp.float32, -scale, scale)
    wk = jax.random.uniform(k5, (H, H), jnp.float32, -scale, scale)
    bk = jax.random.uniform(k6, (H,), jnp.float32, -scale, scale)
    v = jax.random.uniform(k7, (1, H), jnp.float32, -scale, scale)  # Linear(H,1,bias=False)

    out = pointer_attention(cur_embedd, centroids, wq, bq, wk, bk, v)
    out = jax.block_until_ready(out)

    ref = pointer_attention_ref(cur_embedd, centroids, wq, bq, wk, bk, v)
    assert out.shape == (B, N)
    assert jnp.allclose(out, ref, atol=1e-4, rtol=1e-4), "mismatch vs reference"

    print("KERNEL_OK")
</pallas_src>

<mosaic_0001>
module attributes {stable_mosaic.version = 11 : i64} {
  func.func @pointer_attention_kernel(%arg0: i32, %arg1: i32, %arg2: memref<2x1x128xf32, #tpu.memory_space<vmem>>, %arg3: memref<2x8x128xf32, #tpu.memory_space<vmem>>, %arg4: memref<128x128xf32, #tpu.memory_space<vmem>>, %arg5: memref<1x128xf32, #tpu.memory_space<vmem>>, %arg6: memref<2x8xf32, #tpu.memory_space<vmem>>) attributes {dimension_semantics = [#tpu.dimension_semantics<parallel>, #tpu.dimension_semantics<parallel>], iteration_bounds = array<i64: 1, 1>, scalar_prefetch = 0 : i64, scratch_operands = 0 : i64, tpu.core_type = #tpu.core_type<tc>, window_params = [{transform_indices = @transform_0, window_bounds = array<i64: 2, 1, 128>}, {transform_indices = @transform_1, window_bounds = array<i64: 2, 8, 128>}, {pipeline_mode = #tpu.pipeline_mode<synchronous>, transform_indices = @transform_2, window_bounds = array<i64: 128, 128>}, {pipeline_mode = #tpu.pipeline_mode<synchronous>, transform_indices = @transform_3, window_bounds = array<i64: 1, 128>}, {transform_indices = @transform_4, window_bounds = array<i64: 2, 8>}]} {
    %c0 = arith.constant 0 : index
    %c0_0 = arith.constant 0 : index
    %c0_1 = arith.constant 0 : index
    %0 = vector.load %arg3[%c0, %c0_0, %c0_1] : memref<2x8x128xf32, #tpu.memory_space<vmem>>, vector<2x8x128xf32>
    %1 = vector.shape_cast %0 : vector<2x8x128xf32> to vector<16x128xf32>
    %c0_2 = arith.constant 0 : index
    %c0_3 = arith.constant 0 : index
    %2 = vector.load %arg4[%c0_2, %c0_3] : memref<128x128xf32, #tpu.memory_space<vmem>>, vector<128x128xf32>
    %cst = arith.constant dense<0.000000e+00> : vector<16x128xf32>
    %3 = tpu.matmul %1, %2, %cst {dimension_numbers = #tpu.dot_dimension_numbers<[1], [0], [0], [1], [0, 0, 1, 1], [], []>} : vector<16x128xf32>, vector<128x128xf32>, vector<16x128xf32> -> vector<16x128xf32>
    %4 = vector.shape_cast %3 : vector<16x128xf32> to vector<2x8x128xf32>
    %c0_4 = arith.constant 0 : index
    %c0_5 = arith.constant 0 : index
    %c0_6 = arith.constant 0 : index
    %5 = vector.load %arg2[%c0_4, %c0_5, %c0_6] : memref<2x1x128xf32, #tpu.memory_space<vmem>>, vector<2x1x128xf32>
    %6 = vector.broadcast %5 : vector<2x1x128xf32> to vector<2x8x128xf32>
    %7 = arith.addf %4, %6 : vector<2x8x128xf32>
    %8 = math.tanh %7 : vector<2x8x128xf32>
    %c0_7 = arith.constant 0 : index
    %c0_8 = arith.constant 0 : index
    %9 = vector.load %arg5[%c0_7, %c0_8] : memref<1x128xf32, #tpu.memory_space<vmem>>, vector<1x128xf32>
    %10 = vector.shape_cast %9 : vector<1x128xf32> to vector<1x1x128xf32>
    %11 = vector.broadcast %10 : vector<1x1x128xf32> to vector<2x8x128xf32>
    %12 = arith.mulf %8, %11 : vector<2x8x128xf32>
    %cst_9 = arith.constant dense<0.000000e+00> : vector<2x8xf32>
    %13 = vector.multi_reduction <add>, %12, %cst_9 [2] : vector<2x8x128xf32> to vector<2x8xf32>
    %c0_10 = arith.constant 0 : index
    %c0_11 = arith.constant 0 : index
    %14 = vector.load %arg6[%c0_10, %c0_11] : memref<2x8xf32, #tpu.memory_space<vmem>>, vector<2x8xf32>
    tpu.vector_store %arg6[%c0_10, %c0_11], %13 {strides = array<i32>} : memref<2x8xf32, #tpu.memory_space<vmem>>, vector<2x8xf32>,
    return
  }
  func.func @transform_0(%arg0: i32, %arg1: i32) -> (i32, i32, i32) {
    %c0_i32 = arith.constant 0 : i32
    %c0_i32_0 = arith.constant 0 : i32
    %c0_i32_1 = arith.constant 0 : i32
    return %arg0, %c0_i32, %c0_i32_0 : i32, i32, i32
  }
  func.func @transform_1(%arg0: i32, %arg1: i32) -> (i32, i32, i32) {
    %c0_i32 = arith.constant 0 : i32
    %c0_i32_0 = arith.constant 0 : i32
    return %arg0, %arg1, %c0_i32 : i32, i32, i32
  }
  func.func @transform_2(%arg0: i32, %arg1: i32) -> (i32, i32) {
    %c0_i32 = arith.constant 0 : i32
    %c0_i32_0 = arith.constant 0 : i32
    %c0_i32_1 = arith.constant 0 : i32
    return %c0_i32, %c0_i32_0 : i32, i32
  }
  func.func @transform_3(%arg0: i32, %arg1: i32) -> (i32, i32) {
    %c0_i32 = arith.constant 0 : i32
    %c0_i32_0 = arith.constant 0 : i32
    %c0_i32_1 = arith.constant 0 : i32
    return %c0_i32, %c0_i32_0 : i32, i32
  }
  func.func @transform_4(%arg0: i32, %arg1: i32) -> (i32, i32) {
    %c0_i32 = arith.constant 0 : i32
    return %arg0, %arg1 : i32, i32
  }
}

</mosaic_0001>

<llo_original>
// kernel: tpu_custom_call.1
$region0: #{tpu_custom_call.1}
  #allocation0 [shape = 'u32[]', space=smem, size = 0x4, offset = 0x4, fixed_abs, tag = 'smem constant byte address 0x4 - core index']
  #allocation1 [shape = 'u32[144,128]{1,0:T(1,128)}', space=vmem, size = 0x12000, scoped, tag = 'internal scratch']
  %s0 = inlined_call_operand.hbm [shape: f32[2,1,128], index: 0, kind: input, shape index: {}]
  %s1 = inlined_call_operand.hbm [shape: f32[2,8,128], index: 1, kind: input, shape index: {}]
  %s2 = inlined_call_operand.hbm [shape: f32[128,128], index: 2, kind: input, shape index: {}]
  %s3 = inlined_call_operand.vmem [shape: f32[1,128], index: 3, kind: input, shape index: {}]
  %s4 = inlined_call_operand.hbm [shape: f32[2,8], index: 4, kind: output, shape index: {}]
  %s5 = sld [smem:[#allocation0]]
  $region38: #{tpu_custom_call.1} parent=0
    _
  %s7 = ssub.s32 1, %s5
  %s8 = scalar_select 0, %s7, %s5
  $region1: #{tpu_custom_call.1} parent=0
    #allocation2 [shape = 'u8[1024]{0}', space=vmem, size = 0x400, scoped, tag = 'input window, operand 0, single buffered']
    #allocation3 [shape = 's32[1]{0}', space=sflag, size = 0x4, scoped, tag = 'scoped memory for tpu_custom_call.1']
    #allocation4 [shape = 's32[1]{0}', space=sflag, size = 0x4, scoped, tag = 'scoped memory for tpu_custom_call.1']
    #allocation5 [shape = 'u8[8192]{0}', space=vmem, size = 0x2000, scoped, tag = 'input window, operand 1, single buffered']
    #allocation6 [shape = 's32[1]{0}', space=sflag, size = 0x4, scoped, tag = 'scoped memory for tpu_custom_call.1']
    #allocation7 [shape = 'u8[65536]{0}', space=vmem, size = 0x10000, scoped, tag = 'input window, operand 2, single buffered']
    #allocation8 [shape = 'u8[1024]{0}', space=vmem, size = 0x400, scoped, tag = 'output window, operand 0, single buffered']
    %9 = vsyncpa [#allocation3], 0
    %10 = vsyncpa [#allocation6], 0
    %11 = vsyncpa [#allocation4], 0
    // Predicated region
    $region2: #{tpu_custom_call.1} parent=1 // pred_check
      _
    $region3: #{tpu_custom_call.1} parent=1 // pred_check_branch
      %13 = sbr.rel (0) target = $region5
    $region4: #{tpu_custom_call.1} parent=1 // pred_region
      %s15 = ssub.s32 32, 32
      %16 = vsyncadd [#allocation3], %s15
      %s17 = sshll.u32 [#allocation2], 4
      %s18 = int_to_ptr.vmem [resolvable:$true] %s17
      %23 = dma.hbm_to_vmem [thread:$0]  %s0, 32, %s18, [#allocation3], 16, 16, 1
    $region5: #{tpu_custom_call.1} parent=1 // pred_fallthru
      _
    // Predicated region
    $region6: #{tpu_custom_call.1} parent=1 // pred_check
      _
    $region7: #{tpu_custom_call.1} parent=1 // pred_check_branch
      %25 = sbr.rel (0) target = $region9
    $region8: #{tpu_custom_call.1} parent=1 // pred_region
      %s27 = ssub.s32 256, 256
      %28 = vsyncadd [#allocation6], %s27
      %s29 = sshll.u32 [#allocation5], 4
      %s30 = int_to_ptr.vmem [resolvable:$true] %s29
      %35 = dma.hbm_to_vmem [thread:$0]  %s1, 256, %s30, [#allocation6], 128, 128, 8
    $region9: #{tpu_custom_call.1} parent=1 // pred_fallthru
      _
    // Predicated region
    $region10: #{tpu_custom_call.1} parent=1 // pred_check
      _
    $region11: #{tpu_custom_call.1} parent=1 // pred_check_branch
      %37 = sbr.rel (0) target = $region13
    $region12: #{tpu_custom_call.1} parent=1 // pred_region
      %s39 = ssub.s32 2048, 2048
      %40 = vsyncadd [#allocation6], %s39
      %s41 = sshll.u32 [#allocation7], 4
      %s42 = int_to_ptr.vmem [resolvable:$true] %s41
      %47 = dma.hbm_to_vmem [thread:$0]  %s2, 2048, %s42, [#allocation6], 128, 128, 8
    $region13: #{tpu_custom_call.1} parent=1 // pred_fallthru
      _
    // Predicated region
    $region14: #{tpu_custom_call.1} parent=1 // pred_check
      _
    $region15: #{tpu_custom_call.1} parent=1 // pred_check_branch
      %49 = sbr.rel (0) target = $region17
    $region16: #{tpu_custom_call.1} parent=1 // pred_region
      _
    $region17: #{tpu_custom_call.1} parent=1 // pred_fallthru
      _
    // Predicated region
    $region18: #{tpu_custom_call.1} parent=1 // pred_check
      _
    $region19: #{tpu_custom_call.1} parent=1 // pred_check_branch
      %51 = sbr.rel (0) target = $region21
    $region20: #{tpu_custom_call.1} parent=1 // pred_region
      %52 = dma.done [#allocation3], 32
    $region21: #{tpu_custom_call.1} parent=1 // pred_fallthru
      _
    // Predicated region
    $region22: #{tpu_custom_call.1} parent=1 // pred_check
      _
    $region23: #{tpu_custom_call.1} parent=1 // pred_check_branch
      %54 = sbr.rel (0) target = $region25
    $region24: #{tpu_custom_call.1} parent=1 // pred_region
      %55 = dma.done [#allocation6], 256
    $region25: #{tpu_custom_call.1} parent=1 // pred_fallthru
      _
    // Predicated region
    $region26: #{tpu_custom_call.1} parent=1 // pred_check
      _
    $region27: #{tpu_custom_call.1} parent=1 // pred_check_branch
      %57 = sbr.rel (0) target = $region29
    $region28: #{tpu_custom_call.1} parent=1 // pred_region
      %58 = dma.done [#allocation6], 2048
    $region29: #{tpu_custom_call.1} parent=1 // pred_fallthru
      _
    %v59 = vld [vmem:[#allocation5] sm:$0xff]
    %v60 = vld [vmem:[#allocation5 + $0x8] sm:$0xff]
    %v61 = vld [vmem:[#allocation7] sm:$0xff]
    %v62 = vld [vmem:[#allocation7 + $0x8] sm:$0xff]
    %v63 = vld [vmem:[#allocation7 + $0x10] sm:$0xff]
    %v64 = vld [vmem:[#allocation7 + $0x18] sm:$0xff]
    %v65 = vld [vmem:[#allocation7 + $0x20] sm:$0xff]
    %v66 = vld [vmem:[#allocation7 + $0x28] sm:$0xff]
    %v67 = vld [vmem:[#allocation7 + $0x30] sm:$0xff]
    %v68 = vld [vmem:[#allocation7 + $0x38] sm:$0xff]
    %v69 = vld [vmem:[#allocation7 + $0x40] sm:$0xff]
    %v70 = vld [vmem:[#allocation7 + $0x48] sm:$0xff]
    %v71 = vld [vmem:[#allocation7 + $0x50] sm:$0xff]
    %v72 = vld [vmem:[#allocation7 + $0x58] sm:$0xff]
    %v73 = vld [vmem:[#allocation7 + $0x60] sm:$0xff]
    %v74 = vld [vmem:[#allocation7 + $0x68] sm:$0xff]
    %v75 = vld [vmem:[#allocation7 + $0x70] sm:$0xff]
    %v76 = vld [vmem:[#allocation7 + $0x78] sm:$0xff]
    %77 = vmatprep.subr.mxu0 0.0
    %78 = vmatpush1.msra.mxu0 %v61
    %79 = vmatprep.subr.mxu0 0.0
    %80 = vmatpush1.msra.mxu0 %v62
    %81 = vmatprep.subr.mxu0 0.0
    %82 = vmatpush1.msra.mxu0 %v63
    %83 = vmatprep.subr.mxu0 0.0
    %84 = vmatpush1.msra.mxu0 %v64
    %85 = vmatprep.subr.mxu0 0.0
    %86 = vmatpush1.msra.mxu0 %v65
    %87 = vmatprep.subr.mxu0 0.0
    %88 = vmatpush1.msra.mxu0 %v66
    %89 = vmatprep.subr.mxu0 0.0
    %90 = vmatpush1.msra.mxu0 %v67
    %91 = vmatprep.subr.mxu0 0.0
    %92 = vmatpush1.msra.mxu0 %v68
    %93 = vmatprep.subr.mxu0 0.0
    %94 = vmatpush1.msra.mxu0 %v69
    %95 = vmatprep.subr.mxu0 0.0
    %96 = vmatpush1.msra.mxu0 %v70
    %97 = vmatprep.subr.mxu0 0.0
    %98 = vmatpush1.msra.mxu0 %v71
    %99 = vmatprep.subr.mxu0 0.0
    %100 = vmatpush1.msra.mxu0 %v72
    %101 = vmatprep.subr.mxu0 0.0
    %102 = vmatpush1.msra.mxu0 %v73
    %103 = vmatprep.subr.mxu0 0.0
    %104 = vmatpush1.msra.mxu0 %v74
    %105 = vmatprep.subr.mxu0 0.0
    %106 = vmatpush1.msra.mxu0 %v75
    %107 = vmatprep.subr.mxu0 0.0
    %108 = vmatpush1.msra.mxu0 %v76
    %109 = vmatprep.subr.mxu0 0.0
    %110 = vmatpush1.msra.mxu0 0.0
    %111 = vmatprep.subr.mxu0 0.0
    %112 = vmatpush1.msra.mxu0 0.0
    %113 = vmatprep.subr.mxu0 0.0
    %114 = vmatpush1.msra.mxu0 0.0
    %115 = vmatprep.subr.mxu0 0.0
    %116 = vmatpush1.msra.mxu0 0.0
    %117 = vmatprep.subr.mxu0 0.0
    %118 = vmatpush1.msra.mxu0 0.0
    %119 = vmatprep.subr.mxu0 0.0
    %120 = vmatpush1.msra.mxu0 0.0
    %121 = vmatprep.subr.mxu0 0.0
    %122 = vmatpush1.msra.mxu0 0.0
    %123 = vmatprep.subr.mxu0 0.0
    %124 = vmatpush1.msra.mxu0 0.0
    %125 = vmatprep.subr.mxu0 0.0
    %126 = vmatpush1.msra.mxu0 0.0
    %127 = vmatprep.subr.mxu0 0.0
    %128 = vmatpush1.msra.mxu0 0.0
    %129 = vmatprep.subr.mxu0 0.0
    %130 = vmatpush1.msra.mxu0 0.0
    %131 = vmatprep.subr.mxu0 0.0
    %132 = vmatpush1.msra.mxu0 0.0
    %133 = vmatprep.subr.mxu0 0.0
    %134 = vmatpush1.msra.mxu0 0.0
    %135 = vmatprep.subr.mxu0 0.0
    %136 = vmatpush1.msra.mxu0 0.0
    %137 = vmatprep.subr.mxu0 0.0
    %138 = vmatpush1.msra.mxu0 0.0
    %139 = vmatprep.subr.mxu0 0.0
    %140 = vmatpush1.msra.mxu0 0.0
    %141 = vmatprep.mubr.f32.mxu0 0.0
    %142 = vmatmul.mubr.f32.gmra.mrb[0].mxu0 %v59
    %v143 = vpop.f32.mrb[0].mxu0
    %v144 = vadd.f32 0.0, %v143
    %v145 = vpop.f32.mrb[0].mxu0
    %146 = vmatprep.mubr.f32.mxu0 0.0
    %147 = vmatmul.mubr.f32.gmra.mrb[0].mxu0 %v60
    %v148 = vpop.f32.mrb[0].mxu0
    %v149 = vadd.f32 0.0, %v148
    %v150 = vpop.f32.mrb[0].mxu0
    %151 = vdwg.mxu0
    %v152 = vld [vmem:[#allocation2] sm:$0x1]
    %v153 = vld [vmem:[#allocation2 + $0x1] sm:$0x1]
    %v156 = vlaneseq
    %v157 = vshrl.u32 %v156, 7
    %v158 = vsub.s32 0, %v157
    %v159 = vrot.slane %v152, %v158
    %v160 = vlaneseq
    %v161 = vshrl.u32 %v160, 7
    %v162 = vsub.s32 0, %v161
    %v163 = vrot.slane %v153, %v162
    %v166 = vadd.f32 %v144, %v159
    %v167 = vadd.f32 %v149, %v163
    %v168 = vtanh.pop %v166
    %v169 = vtanh.pop %v167
    %v170 = vld [vmem:[%s3] sm:$0x1]
    %v172 = vlaneseq
    %v173 = vshrl.u32 %v172, 7
    %v174 = vsub.s32 0, %v173
    %v175 = vrot.slane %v170, %v174
    %v177 = vmul.f32 %v168, %v175
    %v178 = vmul.f32 %v169, %v175
    %179 = vadd.xlane.f32.xlu0 %v177
    %v180 = vpop.xlane.xlu0 %179
    %181 = vadd.xlane.f32.xlu0 %v178
    %v182 = vpop.xlane.xlu0 %181
    %v185 = vlaneseq
    %v186 = vand.u32 %v185, 127
    %v187 = vlaneseq
    %v188 = vshrl.u32 %v187, 7
    %v189 = vsub.s32 %v186, %v188
    %v190 = vrot.slane %v180, %v189
    %v191 = vlaneseq
    %v192 = vshrl.u32 %v191, 7
    %v193 = vsub.s32 %v186, %v192
    %v194 = vrot.slane %v182, %v193
    %vm195 = vcmask 1041409
    %v196 = vsel %vm195, %v194, %v190
    %vm198 = vcmask 58368
    %199 = vst.msk [vmem:[#allocation8] sm:$0x3] %vm198, %v196
    // Predicated region
    $region30: #{tpu_custom_call.1} parent=1 // pred_check
      _
    $region31: #{tpu_custom_call.1} parent=1 // pred_check_branch
      %201 = sbr.rel (0) target = $region33
    $region32: #{tpu_custom_call.1} parent=1 // pred_region
      %s203 = ssub.s32 32, 32
      %204 = vsyncadd [#allocation4], %s203
      %s206 = sshll.u32 [#allocation8], 4
      %s207 = int_to_ptr.vmem [resolvable:$true] %s206
      %209 = dma.vmem_to_hbm [thread:$0]  %s207, 32, %s4, [#allocation4]
    $region33: #{tpu_custom_call.1} parent=1 // pred_fallthru
      _
    // Predicated region
    $region34: #{tpu_custom_call.1} parent=1 // pred_check
      _
    $region35: #{tpu_custom_call.1} parent=1 // pred_check_branch
      %211 = sbr.rel (0) target = $region37
    $region36: #{tpu_custom_call.1} parent=1 // pred_region
      %212 = dma.done [#allocation4], 32
    $region37: #{tpu_custom_call.1} parent=1 // pred_fallthru
      _
    %213 = vsyncpa [#allocation3], 1
    %214 = vsyncpa [#allocation6], 1
    %215 = vsyncpa [#allocation4], 1

</llo_original>
